<compile_context>
chip_gen: v7x
topology: tpu7x:2x2x1
jax: 0.10.0
libtpu: 0.0.40
codegen_flags: <defaults>
</compile_context>

<pallas_src>
import functools

import jax
import jax.numpy as jnp
from jax.experimental import pallas as pl
from jax.experimental.pallas import tpu as pltpu


def _layernorm_kernel(alpha_ref, beta_ref, x_ref, o_ref, *, eps: float, d: int):
    # x_ref block: (ROW_TILE, D).  Reduce over the last (lane) dim.
    x = x_ref[...].astype(jnp.float32)

    # Two-pass mean / variance (numerically safe: no catastrophic cancellation
    # for activations with a large DC offset).  Memory-bound kernel -> the
    # second cross-lane reduce is hidden under HBM bandwidth.
    mean = jnp.sum(x, axis=-1, keepdims=True) * jnp.float32(1.0 / d)
    xc = x - mean
    # PyTorch x.std() uses Bessel's correction (ddof = 1).  Guard d == 1 to
    # avoid a hard 0/0 (torch would return NaN in that degenerate case).
    var = jnp.sum(xc * xc, axis=-1, keepdims=True) * jnp.float32(
        1.0 / max(d - 1, 1))
    std = jnp.sqrt(var)

    # Exact reciprocal (not approx): matches torch's exact division and is
    # free at this bandwidth.
    inv = jnp.float32(1.0) / (std + jnp.float32(eps))

    alpha = alpha_ref[0]
    beta = beta_ref[0]
    # One broadcasted FMA per element: alpha * (x - mean) / (std + eps) + beta.
    o_ref[...] = (xc * (alpha * inv) + beta).astype(o_ref.dtype)


def _round_up(x: int, m: int) -> int:
    return (x + m - 1) // m * m


def _sublane_multiple(dtype) -> int:
    itemsize = jnp.dtype(dtype).itemsize
    return {4: 8, 2: 16, 1: 32}.get(itemsize, 8)


def _tpu_hw_params():
    """Best-effort (VMEM capacity, TensorCores/chip) query with safe fallbacks."""
    vmem_cap = 128 << 20
    num_tc = 1
    try:
        info = pltpu.get_tpu_info()
        cap = getattr(info, "vmem_capacity_bytes", None)
        if cap:
            vmem_cap = int(cap)
        for name in ("num_tensorcores", "tensorcores_per_chip",
                     "num_cores", "cores_per_chip"):
            v = getattr(info, name, None)
            if v:
                num_tc = int(v)
                break
    except Exception:
        pass
    # v7x signature: 64 MiB VMEM per TC, 2 TCs per chip.
    if num_tc == 1 and vmem_cap <= (64 << 20):
        num_tc = 2
    return vmem_cap, num_tc


def pallas_layernorm(x, alpha, beta, *, eps: float = 1e-6):
    """LayerNorm over the last axis of x (any leading shape), Pallas TPU kernel."""
    orig_shape = x.shape
    d = orig_shape[-1]
    x2 = x.reshape(-1, d)                      # (R, D)
    r = x2.shape[0]
    itemsize = jnp.dtype(x.dtype).itemsize
    sub = _sublane_multiple(x.dtype)

    vmem_cap, num_tc = _tpu_hw_params()
    # Generation-aware block target: big blocks amortize the ~0.35 us
    # per-grid-step cost; v7x's smaller VMEM gets a smaller target.
    target_block_bytes = (8 << 20) if vmem_cap >= (128 << 20) else (4 << 20)

    # Rows per block: dtype-aware sublane multiple, never bigger than the data.
    rows = max(sub, target_block_bytes // max(1, d * itemsize))
    rows = max(sub, (rows // sub) * sub)
    rows = min(rows, _round_up(r, sub))

    # Multi-TC chips (v7x): keep >= 2 grid steps per TensorCore when the data
    # allows, so each core can overlap DMA-in / compute / DMA-out.  Single-TC
    # chips (v5e/v6e) keep the biggest possible block (no forced split).
    if num_tc > 1:
        min_steps = 2 * num_tc
        if r > min_steps * sub:
            rows = min(rows, max(sub, _round_up(pl.cdiv(r, min_steps), sub)))

    grid = (pl.cdiv(r, rows),)                 # partial last block is fine:
    block_bytes = rows * d * itemsize          # rows are independent.

    # vmem limit derived from the *actual* block size (double-buffered in+out
    # = 4x block) with headroom, capped at half the physical VMEM.
    vmem_needed = 4 * block_bytes + (4 << 20)
    vmem_limit = int(min(vmem_cap // 2, max(32 << 20, vmem_needed)))

    cost = pl.CostEstimate(
        flops=10 * r * d,
        transcendentals=2 * r,
        bytes_accessed=2 * r * d * itemsize,
    )

    out = pl.pallas_call(
        functools.partial(_layernorm_kernel, eps=eps, d=d),
        out_shape=jax.ShapeDtypeStruct((r, d), x.dtype),
        grid_spec=pltpu.PrefetchScalarGridSpec(
            num_scalar_prefetch=0,
            grid=grid,
            in_specs=[
                pl.BlockSpec(memory_space=pltpu.SMEM),        # alpha (1,)
                pl.BlockSpec(memory_space=pltpu.SMEM),        # beta  (1,)
                pl.BlockSpec((rows, d), lambda i: (i, 0)),    # x rows
            ],
            out_specs=pl.BlockSpec((rows, d), lambda i: (i, 0)),
        ),
        compiler_params=pltpu.CompilerParams(
            dimension_semantics=("parallel",),
            vmem_limit_bytes=vmem_limit,
        ),
        cost_estimate=cost,
    )(alpha, beta, x2)

    return out.reshape(orig_shape)


class Encoder:
    """JAX/Pallas port of the PyTorch Encoder module."""

    def __init__(self, layers=(), eps: float = 1e-6):
        # Deterministic parameter init, matching nn.Parameter(torch.ones(1)/zeros(1)).
        self.layers = list(layers)
        self.eps = eps
        self.alpha = jnp.ones((1,), dtype=jnp.float32)
        self.beta = jnp.zeros((1,), dtype=jnp.float32)

    def __call__(self, x, mask):
        for layer in self.layers:
            x = layer(x, mask)
        return pallas_layernorm(x, self.alpha, self.beta, eps=self.eps)


if __name__ == "__main__":
    key = jax.random.PRNGKey(0)
    # d_model chosen as a multiple of 128 so output stores are lane-dense.
    batch, seq, d_model = 2, 8, 128
    kx, _ = jax.random.split(key)
    x = jax.random.normal(kx, (batch, seq, d_model), dtype=jnp.float32)
    mask = jnp.ones((batch, 1, seq, seq), dtype=jnp.float32)  # unused by identity layers

    enc = Encoder(layers=[])  # TODO(synk): plug real encoder-layer callables here
    y = jax.block_until_ready(enc(x, mask))

    # Pure-JAX reference of the same math (unbiased std, eps added to std).
    mean = jnp.mean(x, axis=-1, keepdims=True)
    std = jnp.std(x, axis=-1, keepdims=True, ddof=1)
    ref = enc.alpha[0] * (x - mean) / (std + enc.eps) + enc.beta[0]

    assert y.shape == x.shape and y.dtype == x.dtype
    err = float(jnp.max(jnp.abs(y - ref)))
    assert err < 1e-4, f"max abs err {err}"

    print("KERNEL_OK")
</pallas_src>

<mosaic_0001>
module attributes {stable_mosaic.version = 11 : i64} {
  func.func @_layernorm_kernel(%arg0: i32, %arg1: memref<1xf32, #tpu.memory_space<smem>>, %arg2: memref<1xf32, #tpu.memory_space<smem>>, %arg3: memref<16x128xf32, #tpu.memory_space<vmem>>, %arg4: memref<16x128xf32, #tpu.memory_space<vmem>>) attributes {dimension_semantics = [#tpu.dimension_semantics<parallel>], iteration_bounds = array<i64: 1>, scalar_prefetch = 0 : i64, scratch_operands = 0 : i64, tpu.core_type = #tpu.core_type<tc>, window_params = [{transform_indices = @transform_0, window_bounds = array<i64: 1>}, {transform_indices = @transform_1, window_bounds = array<i64: 1>}, {transform_indices = @transform_2, window_bounds = array<i64: 16, 128>}, {transform_indices = @transform_3, window_bounds = array<i64: 16, 128>}]} {
    %c0 = arith.constant 0 : index
    %c0_0 = arith.constant 0 : index
    %0 = vector.load %arg3[%c0, %c0_0] : memref<16x128xf32, #tpu.memory_space<vmem>>, vector<16x128xf32>
    %cst = arith.constant dense<0.000000e+00> : vector<16xf32>
    %1 = vector.multi_reduction <add>, %0, %cst [1] : vector<16x128xf32> to vector<16xf32>
    %2 = vector.shape_cast %1 : vector<16xf32> to vector<16x1xf32>
    %cst_1 = arith.constant 7.812500e-03 : f32
    %3 = vector.broadcast %cst_1 : f32 to vector<16x1xf32>
    %4 = arith.mulf %2, %3 : vector<16x1xf32>
    %5 = vector.broadcast %4 : vector<16x1xf32> to vector<16x128xf32>
    %6 = arith.subf %0, %5 : vector<16x128xf32>
    %7 = arith.mulf %6, %6 : vector<16x128xf32>
    %cst_2 = arith.constant dense<0.000000e+00> : vector<16xf32>
    %8 = vector.multi_reduction <add>, %7, %cst_2 [1] : vector<16x128xf32> to vector<16xf32>
    %9 = vector.shape_cast %8 : vector<16xf32> to vector<16x1xf32>
    %cst_3 = arith.constant 0.00787401571 : f32
    %10 = vector.broadcast %cst_3 : f32 to vector<16x1xf32>
    %11 = arith.mulf %9, %10 : vector<16x1xf32>
    %12 = math.sqrt %11 : vector<16x1xf32>
    %cst_4 = arith.constant 9.99999997E-7 : f32
    %13 = vector.broadcast %cst_4 : f32 to vector<16x1xf32>
    %14 = arith.addf %12, %13 : vector<16x1xf32>
    %cst_5 = arith.constant 1.000000e+00 : f32
    %15 = vector.broadcast %cst_5 : f32 to vector<16x1xf32>
    %16 = arith.divf %15, %14 : vector<16x1xf32>
    %c0_6 = arith.constant 0 : index
    %17 = memref.load %arg1[%c0_6] : memref<1xf32, #tpu.memory_space<smem>>
    %c0_7 = arith.constant 0 : index
    %18 = memref.load %arg2[%c0_7] : memref<1xf32, #tpu.memory_space<smem>>
    %19 = vector.broadcast %17 : f32 to vector<16x1xf32>
    %20 = arith.mulf %19, %16 : vector<16x1xf32>
    %21 = vector.broadcast %20 : vector<16x1xf32> to vector<16x128xf32>
    %22 = arith.mulf %6, %21 : vector<16x128xf32>
    %23 = vector.broadcast %18 : f32 to vector<16x128xf32>
    %24 = arith.addf %22, %23 : vector<16x128xf32>
    %c0_8 = arith.constant 0 : index
    %c0_9 = arith.constant 0 : index
    %25 = vector.load %arg4[%c0_8, %c0_9] : memref<16x128xf32, #tpu.memory_space<vmem>>, vector<16x128xf32>
    tpu.vector_store %arg4[%c0_8, %c0_9], %24 {strides = array<i32>} : memref<16x128xf32, #tpu.memory_space<vmem>>, vector<16x128xf32>,
    return
  }
  func.func @transform_0(%arg0: i32) -> i32 {
    %c0_i32 = arith.constant 0 : i32
    %c0_i32_0 = arith.constant 0 : i32
    return %c0_i32 : i32
  }
  func.func @transform_1(%arg0: i32) -> i32 {
    %c0_i32 = arith.constant 0 : i32
    %c0_i32_0 = arith.constant 0 : i32
    return %c0_i32 : i32
  }
  func.func @transform_2(%arg0: i32) -> (i32, i32) {
    %c0_i32 = arith.constant 0 : i32
    %c0_i32_0 = arith.constant 0 : i32
    return %arg0, %c0_i32 : i32, i32
  }
  func.func @transform_3(%arg0: i32) -> (i32, i32) {
    %c0_i32 = arith.constant 0 : i32
    %c0_i32_0 = arith.constant 0 : i32
    return %arg0, %c0_i32 : i32, i32
  }
}

</mosaic_0001>

<llo_original>
// kernel: tpu_custom_call.1
$region0: #{tpu_custom_call.1}
  #allocation0 [shape = 'u32[]', space=smem, size = 0x4, offset = 0x4, fixed_abs, tag = 'smem constant byte address 0x4 - core index']
  #allocation1 [shape = 'u32[144,128]{1,0:T(1,128)}', space=vmem, size = 0x12000, scoped, tag = 'internal scratch']
  #allocation2 [shape = 'f32[1]{0:T(128)S(6)}', space=smem, size = 0x200, scoped, tag = 'scoped memory for tpu_custom_call.1']
  #allocation3 [shape = 'f32[1]{0:T(128)S(6)}', space=smem, size = 0x200, scoped, tag = 'scoped memory for tpu_custom_call.1']
  %s0 = inlined_call_operand.<no memory space> [shape: f32[1], index: 0, kind: input, shape index: {}]
  %s1 = inlined_call_operand.<no memory space> [shape: f32[1], index: 1, kind: input, shape index: {}]
  %s2 = inlined_call_operand.hbm [shape: f32[16,128], index: 2, kind: input, shape index: {}]
  %s3 = inlined_call_operand.hbm [shape: f32[16,128], index: 3, kind: output, shape index: {}]
  %s4 = sld [smem:[#allocation0]]
  $region26: #{tpu_custom_call.1} parent=0
    _
  %s6 = ssub.s32 1, %s4
  %s7 = scalar_select 0, %s6, %s4
  %8 = sst [smem:[#allocation2]] %s0
  %9 = sst [smem:[#allocation3]] %s1
  $region1: #{tpu_custom_call.1} parent=0
    #allocation4 [shape = 'u8[8192]{0}', space=vmem, size = 0x2000, scoped, tag = 'input window, operand 2, single buffered']
    #allocation5 [shape = 's32[1]{0}', space=sflag, size = 0x4, scoped, tag = 'scoped memory for tpu_custom_call.1']
    #allocation6 [shape = 's32[1]{0}', space=sflag, size = 0x4, scoped, tag = 'scoped memory for tpu_custom_call.1']
    #allocation7 [shape = 'u8[8192]{0}', space=vmem, size = 0x2000, scoped, tag = 'output window, operand 0, single buffered']
    %10 = vsyncpa [#allocation5], 0
    %11 = vsyncpa [#allocation6], 0
    // Predicated region
    $region2: #{tpu_custom_call.1} parent=1 // pred_check
      _
    $region3: #{tpu_custom_call.1} parent=1 // pred_check_branch
      %13 = sbr.rel (0) target = $region5
    $region4: #{tpu_custom_call.1} parent=1 // pred_region
      _
    $region5: #{tpu_custom_call.1} parent=1 // pred_fallthru
      _
    // Predicated region
    $region6: #{tpu_custom_call.1} parent=1 // pred_check
      _
    $region7: #{tpu_custom_call.1} parent=1 // pred_check_branch
      %15 = sbr.rel (0) target = $region9
    $region8: #{tpu_custom_call.1} parent=1 // pred_region
      _
    $region9: #{tpu_custom_call.1} parent=1 // pred_fallthru
      _
    // Predicated region
    $region10: #{tpu_custom_call.1} parent=1 // pred_check
      _
    $region11: #{tpu_custom_call.1} parent=1 // pred_check_branch
      %17 = sbr.rel (0) target = $region13
    $region12: #{tpu_custom_call.1} parent=1 // pred_region
      %s19 = ssub.s32 256, 256
      %20 = vsyncadd [#allocation5], %s19
      %s21 = sshll.u32 [#allocation4], 4
      %s22 = int_to_ptr.vmem [resolvable:$true] %s21
      %27 = dma.hbm_to_vmem [thread:$0]  %s2, 256, %s22, [#allocation5], 128, 128, 8
    $region13: #{tpu_custom_call.1} parent=1 // pred_fallthru
      _
    // Predicated region
    $region14: #{tpu_custom_call.1} parent=1 // pred_check
      _
    $region15: #{tpu_custom_call.1} parent=1 // pred_check_branch
      %29 = sbr.rel (0) target = $region17
    $region16: #{tpu_custom_call.1} parent=1 // pred_region
      %30 = dma.done [#allocation5], 256
    $region17: #{tpu_custom_call.1} parent=1 // pred_fallthru
      _
    %v31 = vld [vmem:[#allocation4] sm:$0xff]
    %v32 = vld [vmem:[#allocation4 + $0x8] sm:$0xff]
    %33 = vadd.xlane.f32.xlu0 %v31
    %v34 = vpop.xlane.xlu0 %33
    %35 = vadd.xlane.f32.xlu0 %v32
    %v36 = vpop.xlane.xlu0 %35
    %v37 = vmul.f32 %v34, 0.0078125
    %v38 = vmul.f32 %v36, 0.0078125
    %v39 = vsub.f32 %v31, %v37
    %v40 = vsub.f32 %v32, %v38
    %v41 = vmul.f32 %v39, %v39
    %v42 = vmul.f32 %v40, %v40
    %43 = vadd.xlane.f32.xlu0 %v41
    %v44 = vpop.xlane.xlu0 %43
    %45 = vadd.xlane.f32.xlu0 %v42
    %v46 = vpop.xlane.xlu0 %45
    %v47 = vmul.f32 %v44, 0.007874016
    %v48 = vmul.f32 %v46, 0.007874016
    %v49 = vrsqrt.pop %v47
    %v50 = vmul.f32 %v47, %v49
    %vm51 = vcmp.eq.f32.partialorder %v47, inf
    %v52 = vsel %vm51, %v47, %v50
    %vm53 = vcmp.eq.f32.partialorder %v47, 0.0
    %v54 = vand.u32 %v47, 2147483648
    %v55 = vsel %vm53, %v54, %v52
    %v56 = vrsqrt.pop %v48
    %v57 = vmul.f32 %v48, %v56
    %vm58 = vcmp.eq.f32.partialorder %v48, inf
    %v59 = vsel %vm58, %v48, %v57
    %vm60 = vcmp.eq.f32.partialorder %v48, 0.0
    %v61 = vand.u32 %v48, 2147483648
    %v62 = vsel %vm60, %v61, %v59
    %v63 = vadd.f32 %v55, 1e-06
    %v64 = vadd.f32 %v62, 1e-06
    %v65 = vrcp.pop %v63
    %v66 = vmul.f32 1.0, %v65
    %v67 = vrcp.pop %v64
    %v68 = vmul.f32 1.0, %v67
    %s69 = sld [smem:[#allocation2]]
    %s70 = sld [smem:[#allocation3]]
    %v71 = vstv %s69
    %v72 = vmul.f32 %v71, %v66
    %v73 = vmul.f32 %v71, %v68
    %v74 = vmul.f32 %v39, %v72
    %v75 = vmul.f32 %v40, %v73
    %v76 = vstv %s70
    %v77 = vadd.f32 %v74, %v76
    %v78 = vadd.f32 %v75, %v76
    %79 = vst [vmem:[#allocation7] sm:$0xff] %v77
    %80 = vst [vmem:[#allocation7 + $0x8] sm:$0xff] %v78
    // Predicated region
    $region18: #{tpu_custom_call.1} parent=1 // pred_check
      _
    $region19: #{tpu_custom_call.1} parent=1 // pred_check_branch
      %82 = sbr.rel (0) target = $region21
    $region20: #{tpu_custom_call.1} parent=1 // pred_region
      %s84 = ssub.s32 256, 256
      %85 = vsyncadd [#allocation6], %s84
      %s86 = sshll.u32 [#allocation7], 4
      %s87 = int_to_ptr.vmem [resolvable:$true] %s86
      %92 = dma.vmem_to_hbm [thread:$0]  %s87, 256, %s3, [#allocation6], 128, 128, 8
    $region21: #{tpu_custom_call.1} parent=1 // pred_fallthru
      _
    // Predicated region
    $region22: #{tpu_custom_call.1} parent=1 // pred_check
      _
    $region23: #{tpu_custom_call.1} parent=1 // pred_check_branch
      %94 = sbr.rel (0) target = $region25
    $region24: #{tpu_custom_call.1} parent=1 // pred_region
      %95 = dma.done [#allocation6], 256
    $region25: #{tpu_custom_call.1} parent=1 // pred_fallthru
      _
    %96 = vsyncpa [#allocation5], 1
    %97 = vsyncpa [#allocation6], 1

</llo_original>
